<compile_context>
chip_gen: v7x
topology: tpu7x:2x2x1
jax: 0.10.0
libtpu: 0.0.40
codegen_flags: <defaults>
</compile_context>

<pallas_src>
import jax
import jax.numpy as jnp
import numpy as np
from jax.experimental import pallas as pl
from jax.experimental.pallas import tpu as pltpu

IN_DIM = 13 * 8 * 8   # 832  (full logical contraction dim — no padding)
HID_DIM = 256
OUT_DIM = 128


def _round_up(x, m):
    return (x + m - 1) // m * m


# ----------------------------- Pallas kernel --------------------------------

def _encoder_mlp_kernel(x_ref, w1_ref, b1_ref, w2_ref, b2_ref, o_ref):
    # x:(TB,832) f32, w1:(832,256) bf16, b1:(1,256) f32,
    # w2:(256,128) bf16, b2:(1,128) f32, o:(TB,128) f32
    x = x_ref[...].astype(jnp.bfloat16)                         # cast in-kernel (no pre-pass)
    h = jnp.dot(x, w1_ref[...], preferred_element_type=jnp.float32)
    h = jnp.maximum(h + b1_ref[...], 0.0)                       # ReLU, f32 epilogue
    o = jnp.dot(h.astype(jnp.bfloat16), w2_ref[...],
                preferred_element_type=jnp.float32)
    o_ref[...] = jnp.maximum(o + b2_ref[...], 0.0).astype(o_ref.dtype)  # ReLU


def prepare_params(w1, b1, w2, b2):
    """Cast matmul weights to bf16; keep biases in f32. No K padding (exact 832)."""
    return (jnp.asarray(w1, jnp.bfloat16),                       # (832, 256)
            jnp.asarray(b1, jnp.float32).reshape(1, HID_DIM),    # (1, 256)
            jnp.asarray(w2, jnp.bfloat16),                       # (256, 128)
            jnp.asarray(b2, jnp.float32).reshape(1, OUT_DIM))    # (1, 128)


def encoder_forward(x, params, *, tb=4096, vmem_limit_bytes=56 << 20):
    """Batched ChessWorldModel.encoder: x (B, 832) f32 -> (B, 128) f32.

    x is streamed unpadded (cast to bf16 inside the kernel); weights/biases use
    constant index_maps so they stay VMEM-resident while x / out tiles are
    double-buffered.  Grid is the batch axis, marked "parallel" (v7x megacore).
    Defaults (tb=4096, ~56 MiB VMEM) are safe on v5e/v6e/v7x; raise tb and
    vmem_limit_bytes on 128-MiB-VMEM parts for slightly longer DMA bursts.
    """
    w1, b1, w2, b2 = params
    x = jnp.asarray(x, jnp.float32)
    B = x.shape[0]

    # 16-aligned batch tile (bf16 sublane packing friendly); keep >=2 grid steps
    # for larger batches so both v7x TensorCores get work.
    tb_eff = min(tb, _round_up(B, 16))
    if B > 128:
        tb_eff = min(tb_eff, max(16, _round_up((B + 1) // 2, 16)))
    grid = (pl.cdiv(B, tb_eff),)

    flops = 2 * B * (IN_DIM * HID_DIM + HID_DIM * OUT_DIM)
    bytes_accessed = (B * IN_DIM * 4                # x (f32 in HBM)
                      + IN_DIM * HID_DIM * 2        # w1 bf16
                      + HID_DIM * OUT_DIM * 2       # w2 bf16
                      + (HID_DIM + OUT_DIM) * 4     # biases f32
                      + B * OUT_DIM * 4)            # out f32

    out = pl.pallas_call(
        _encoder_mlp_kernel,
        out_shape=jax.ShapeDtypeStruct((B, OUT_DIM), jnp.float32),
        grid=grid,
        in_specs=[
            pl.BlockSpec((tb_eff, IN_DIM), lambda i: (i, 0)),    # x tile (pipelined, ragged OK)
            pl.BlockSpec((IN_DIM, HID_DIM), lambda i: (0, 0)),   # w1 (resident)
            pl.BlockSpec((1, HID_DIM), lambda i: (0, 0)),        # b1 (resident)
            pl.BlockSpec((HID_DIM, OUT_DIM), lambda i: (0, 0)),  # w2 (resident)
            pl.BlockSpec((1, OUT_DIM), lambda i: (0, 0)),        # b2 (resident)
        ],
        out_specs=pl.BlockSpec((tb_eff, OUT_DIM), lambda i: (i, 0)),
        compiler_params=pltpu.CompilerParams(
            dimension_semantics=("parallel",),       # shard batch tiles across TCs on v7x
            vmem_limit_bytes=vmem_limit_bytes,       # <= v7x's 64 MiB physical VMEM
        ),
        cost_estimate=pl.CostEstimate(flops=flops, transcendentals=0,
                                      bytes_accessed=bytes_accessed),
    )(x, w1, b1, w2, b2)
    return out


def forward(board_planes, params):
    """Single-board forward (mirrors ChessWorldModel.forward): (13,8,8) -> (128,)."""
    x = jnp.asarray(board_planes, jnp.float32).reshape(1, IN_DIM)
    return encoder_forward(x, params)[0]


# ------------------------- deterministic parameters --------------------------

def init_params(key):
    """Deterministic init mirroring nn.Linear's U(-1/sqrt(fan_in), 1/sqrt(fan_in))."""
    k1, k2, k3, k4 = jax.random.split(key, 4)
    lim1 = 1.0 / np.sqrt(IN_DIM)
    lim2 = 1.0 / np.sqrt(HID_DIM)
    w1 = jax.random.uniform(k1, (IN_DIM, HID_DIM), jnp.float32, -lim1, lim1)
    b1 = jax.random.uniform(k2, (1, HID_DIM), jnp.float32, -lim1, lim1)
    w2 = jax.random.uniform(k3, (HID_DIM, OUT_DIM), jnp.float32, -lim2, lim2)
    b2 = jax.random.uniform(k4, (1, OUT_DIM), jnp.float32, -lim2, lim2)
    return w1, b1, w2, b2


# --------------------- host-side board encoding (glue) ----------------------
# TODO(synk): chess.Board parsing / legal-move logic has no Pallas equivalent;
# we synthesize the 13x8x8 plane tensors host-side.

def encode_start_position():
    """(13, 8, 8) float32 planes for the standard chess starting position."""
    planes = np.zeros((13, 8, 8), dtype=np.float32)
    back_rank = [4, 2, 3, 5, 6, 3, 2, 4]  # R N B Q K B N R (piece_type ids)
    for col, pt in enumerate(back_rank):
        planes[pt - 1, 0, col] = 1.0            # white back rank (row 0)
        planes[pt - 1 + 6, 7, col] = 1.0        # black back rank (row 7)
    planes[0, 1, :] = 1.0                       # white pawns (row 1)
    planes[6, 6, :] = 1.0                       # black pawns (row 6)
    return planes


def encode_after_e4():
    """Starting position after the intervention e2 -> e4."""
    planes = encode_start_position()
    planes[0, 1, 4] = 0.0   # remove white pawn from e2
    planes[0, 3, 4] = 1.0   # place white pawn on e4
    return planes


# ------------------------------ reference ------------------------------------

def reference_bf16(x, w1, b1, w2, b2):
    """f32 reference with the same bf16 quantization of matmul inputs."""
    xq = x.astype(jnp.bfloat16).astype(jnp.float32)
    w1q = w1.astype(jnp.bfloat16).astype(jnp.float32)
    w2q = w2.astype(jnp.bfloat16).astype(jnp.float32)
    h = jnp.maximum(xq @ w1q + b1, 0.0)
    hq = h.astype(jnp.bfloat16).astype(jnp.float32)
    return jnp.maximum(hq @ w2q + b2, 0.0)


# --------------------------------- main --------------------------------------

if __name__ == "__main__":
    key = jax.random.PRNGKey(0)
    kp, kx = jax.random.split(key, 2)
    w1, b1, w2, b2 = init_params(kp)
    params = prepare_params(w1, b1, w2, b2)

    # --- Small path: 2 boards (starting position + counterfactual 1.e4) ------
    boards = np.stack([encode_start_position(), encode_after_e4()], axis=0)  # (2,13,8,8)
    x_small = jnp.asarray(boards.reshape(boards.shape[0], -1))               # (2, 832)

    emb = jax.block_until_ready(encoder_forward(x_small, params))            # (2, 128)
    ref = reference_bf16(x_small, w1, b1, w2, b2)
    np.testing.assert_allclose(np.asarray(emb), np.asarray(ref), rtol=2e-2, atol=2e-2)
    assert emb.shape == (2, OUT_DIM) and emb.dtype == jnp.float32

    # Single-board forward (mirrors nn.Module.forward returning (128,))
    emb_single = jax.block_until_ready(forward(boards[0], params))
    np.testing.assert_allclose(np.asarray(emb_single), np.asarray(ref)[0],
                               rtol=2e-2, atol=2e-2)
    assert emb_single.shape == (OUT_DIM,)

    # --- Tiled path: exercise multi-step grid + ragged final block -----------
    x_big = jax.random.bernoulli(kx, 0.05, (300, IN_DIM)).astype(jnp.float32)
    emb_big = jax.block_until_ready(encoder_forward(x_big, params))          # grid=(2,), ragged
    ref_big = reference_bf16(x_big, w1, b1, w2, b2)
    np.testing.assert_allclose(np.asarray(emb_big), np.asarray(ref_big),
                               rtol=2e-2, atol=2e-2)
    assert emb_big.shape == (300, OUT_DIM)

    print("KERNEL_OK")
</pallas_src>

<mosaic_0001>
module attributes {stable_mosaic.version = 11 : i64} {
  func.func @_encoder_mlp_kernel(%arg0: i32, %arg1: memref<16x832xf32, #tpu.memory_space<vmem>>, %arg2: memref<832x256xbf16, #tpu.memory_space<vmem>>, %arg3: memref<1x256xf32, #tpu.memory_space<vmem>>, %arg4: memref<256x128xbf16, #tpu.memory_space<vmem>>, %arg5: memref<1x128xf32, #tpu.memory_space<vmem>>, %arg6: memref<16x128xf32, #tpu.memory_space<vmem>>) attributes {dimension_semantics = [#tpu.dimension_semantics<parallel>], iteration_bounds = array<i64: 1>, scalar_prefetch = 0 : i64, scratch_operands = 0 : i64, tpu.core_type = #tpu.core_type<tc>, window_params = [{transform_indices = @transform_0, window_bounds = array<i64: 16, 832>}, {pipeline_mode = #tpu.pipeline_mode<synchronous>, transform_indices = @transform_1, window_bounds = array<i64: 832, 256>}, {pipeline_mode = #tpu.pipeline_mode<synchronous>, transform_indices = @transform_2, window_bounds = array<i64: 1, 256>}, {pipeline_mode = #tpu.pipeline_mode<synchronous>, transform_indices = @transform_3, window_bounds = array<i64: 256, 128>}, {pipeline_mode = #tpu.pipeline_mode<synchronous>, transform_indices = @transform_4, window_bounds = array<i64: 1, 128>}, {transform_indices = @transform_5, window_bounds = array<i64: 16, 128>}]} {
    %c0 = arith.constant 0 : index
    %c0_0 = arith.constant 0 : index
    %0 = vector.load %arg1[%c0, %c0_0] : memref<16x832xf32, #tpu.memory_space<vmem>>, vector<16x832xf32>
    %1 = arith.truncf %0 : vector<16x832xf32> to vector<16x832xbf16>
    %c0_1 = arith.constant 0 : index
    %c0_2 = arith.constant 0 : index
    %2 = vector.load %arg2[%c0_1, %c0_2] : memref<832x256xbf16, #tpu.memory_space<vmem>>, vector<832x256xbf16>
    %cst = arith.constant dense<0.000000e+00> : vector<16x256xf32>
    %3 = tpu.matmul %1, %2, %cst {dimension_numbers = #tpu.dot_dimension_numbers<[1], [0], [0], [1], [0, 0, 1, 1], [], []>} : vector<16x832xbf16>, vector<832x256xbf16>, vector<16x256xf32> -> vector<16x256xf32>
    %c0_3 = arith.constant 0 : index
    %c0_4 = arith.constant 0 : index
    %4 = vector.load %arg3[%c0_3, %c0_4] : memref<1x256xf32, #tpu.memory_space<vmem>>, vector<1x256xf32>
    %5 = vector.broadcast %4 : vector<1x256xf32> to vector<16x256xf32>
    %6 = arith.addf %3, %5 : vector<16x256xf32>
    %cst_5 = arith.constant 0.000000e+00 : f32
    %7 = vector.broadcast %cst_5 : f32 to vector<16x256xf32>
    %8 = arith.maximumf %6, %7 : vector<16x256xf32>
    %9 = arith.truncf %8 : vector<16x256xf32> to vector<16x256xbf16>
    %c0_6 = arith.constant 0 : index
    %c0_7 = arith.constant 0 : index
    %10 = vector.load %arg4[%c0_6, %c0_7] : memref<256x128xbf16, #tpu.memory_space<vmem>>, vector<256x128xbf16>
    %cst_8 = arith.constant dense<0.000000e+00> : vector<16x128xf32>
    %11 = tpu.matmul %9, %10, %cst_8 {dimension_numbers = #tpu.dot_dimension_numbers<[1], [0], [0], [1], [0, 0, 1, 1], [], []>} : vector<16x256xbf16>, vector<256x128xbf16>, vector<16x128xf32> -> vector<16x128xf32>
    %c0_9 = arith.constant 0 : index
    %c0_10 = arith.constant 0 : index
    %12 = vector.load %arg5[%c0_9, %c0_10] : memref<1x128xf32, #tpu.memory_space<vmem>>, vector<1x128xf32>
    %13 = vector.broadcast %12 : vector<1x128xf32> to vector<16x128xf32>
    %14 = arith.addf %11, %13 : vector<16x128xf32>
    %cst_11 = arith.constant 0.000000e+00 : f32
    %15 = vector.broadcast %cst_11 : f32 to vector<16x128xf32>
    %16 = arith.maximumf %14, %15 : vector<16x128xf32>
    %c0_12 = arith.constant 0 : index
    %c0_13 = arith.constant 0 : index
    %17 = vector.load %arg6[%c0_12, %c0_13] : memref<16x128xf32, #tpu.memory_space<vmem>>, vector<16x128xf32>
    tpu.vector_store %arg6[%c0_12, %c0_13], %16 {strides = array<i32>} : memref<16x128xf32, #tpu.memory_space<vmem>>, vector<16x128xf32>,
    return
  }
  func.func @transform_0(%arg0: i32) -> (i32, i32) {
    %c0_i32 = arith.constant 0 : i32
    %c0_i32_0 = arith.constant 0 : i32
    return %arg0, %c0_i32 : i32, i32
  }
  func.func @transform_1(%arg0: i32) -> (i32, i32) {
    %c0_i32 = arith.constant 0 : i32
    %c0_i32_0 = arith.constant 0 : i32
    %c0_i32_1 = arith.constant 0 : i32
    return %c0_i32, %c0_i32_0 : i32, i32
  }
  func.func @transform_2(%arg0: i32) -> (i32, i32) {
    %c0_i32 = arith.constant 0 : i32
    %c0_i32_0 = arith.constant 0 : i32
    %c0_i32_1 = arith.constant 0 : i32
    return %c0_i32, %c0_i32_0 : i32, i32
  }
  func.func @transform_3(%arg0: i32) -> (i32, i32) {
    %c0_i32 = arith.constant 0 : i32
    %c0_i32_0 = arith.constant 0 : i32
    %c0_i32_1 = arith.constant 0 : i32
    return %c0_i32, %c0_i32_0 : i32, i32
  }
  func.func @transform_4(%arg0: i32) -> (i32, i32) {
    %c0_i32 = arith.constant 0 : i32
    %c0_i32_0 = arith.constant 0 : i32
    %c0_i32_1 = arith.constant 0 : i32
    return %c0_i32, %c0_i32_0 : i32, i32
  }
  func.func @transform_5(%arg0: i32) -> (i32, i32) {
    %c0_i32 = arith.constant 0 : i32
    %c0_i32_0 = arith.constant 0 : i32
    return %arg0, %c0_i32 : i32, i32
  }
}

</mosaic_0001>

<llo_original>
// kernel: tpu_custom_call.1
$region0: #{tpu_custom_call.1}
  #allocation0 [shape = 'u32[]', space=smem, size = 0x4, offset = 0x4, fixed_abs, tag = 'smem constant byte address 0x4 - core index']
  #allocation1 [shape = 'u32[144,128]{1,0:T(1,128)}', space=vmem, size = 0x12000, scoped, tag = 'internal scratch']
  %s0 = inlined_call_operand.hbm [shape: f32[2,832], index: 0, kind: input, shape index: {}]
  %s1 = inlined_call_operand.hbm [shape: bf16[832,256], index: 1, kind: input, shape index: {}]
  %s2 = inlined_call_operand.vmem [shape: f32[1,256], index: 2, kind: input, shape index: {}]
  %s3 = inlined_call_operand.hbm [shape: bf16[256,128], index: 3, kind: input, shape index: {}]
  %s4 = inlined_call_operand.vmem [shape: f32[1,128], index: 4, kind: input, shape index: {}]
  %s5 = inlined_call_operand.hbm [shape: f32[2,128], index: 5, kind: output, shape index: {}]
  %s6 = sld [smem:[#allocation0]]
  $region42: #{tpu_custom_call.1} parent=0
    _
  %s8 = ssub.s32 1, %s6
  %s9 = scalar_select 0, %s8, %s6
  $region1: #{tpu_custom_call.1} parent=0
    #allocation2 [shape = 'u8[57344]{0}', space=vmem, size = 0xe000, scoped, tag = 'input window, operand 0, single buffered']
    #allocation3 [shape = 's32[1]{0}', space=sflag, size = 0x4, scoped, tag = 'scoped memory for tpu_custom_call.1']
    #allocation4 [shape = 's32[1]{0}', space=sflag, size = 0x4, scoped, tag = 'scoped memory for tpu_custom_call.1']
    #allocation5 [shape = 'u8[425984]{0}', space=vmem, size = 0x68000, scoped, tag = 'input window, operand 1, single buffered']
    #allocation6 [shape = 's32[1]{0}', space=sflag, size = 0x4, scoped, tag = 'scoped memory for tpu_custom_call.1']
    #allocation7 [shape = 'u8[65536]{0}', space=vmem, size = 0x10000, scoped, tag = 'input window, operand 3, single buffered']
    #allocation8 [shape = 'u8[8192]{0}', space=vmem, size = 0x2000, scoped, tag = 'output window, operand 0, single buffered']
    %10 = vsyncpa [#allocation3], 0
    %11 = vsyncpa [#allocation6], 0
    %12 = vsyncpa [#allocation4], 0
    // Predicated region
    $region2: #{tpu_custom_call.1} parent=1 // pred_check
      _
    $region3: #{tpu_custom_call.1} parent=1 // pred_check_branch
      %14 = sbr.rel (0) target = $region5
    $region4: #{tpu_custom_call.1} parent=1 // pred_region
      %s16 = ssub.s32 1792, 224
      %17 = vsyncadd [#allocation3], %s16
      %s18 = sshll.u32 [#allocation2], 4
      %s19 = int_to_ptr.vmem [resolvable:$true] %s18
      %24 = dma.hbm_to_vmem [thread:$0]  %s0, 224, %s19, [#allocation3], 224, 224, 14
    $region5: #{tpu_custom_call.1} parent=1 // pred_fallthru
      _
    // Predicated region
    $region6: #{tpu_custom_call.1} parent=1 // pred_check
      _
    $region7: #{tpu_custom_call.1} parent=1 // pred_check_branch
      %26 = sbr.rel (0) target = $region9
    $region8: #{tpu_custom_call.1} parent=1 // pred_region
      %s28 = ssub.s32 13312, 13312
      %29 = vsyncadd [#allocation6], %s28
      %s30 = sshll.u32 [#allocation5], 4
      %s31 = int_to_ptr.vmem [resolvable:$true] %s30
      %36 = dma.hbm_to_vmem [thread:$0]  %s1, 13312, %s31, [#allocation6], 128, 128, 8
    $region9: #{tpu_custom_call.1} parent=1 // pred_fallthru
      _
    // Predicated region
    $region10: #{tpu_custom_call.1} parent=1 // pred_check
      _
    $region11: #{tpu_custom_call.1} parent=1 // pred_check_branch
      %38 = sbr.rel (0) target = $region13
    $region12: #{tpu_custom_call.1} parent=1 // pred_region
      _
    $region13: #{tpu_custom_call.1} parent=1 // pred_fallthru
      _
    // Predicated region
    $region14: #{tpu_custom_call.1} parent=1 // pred_check
      _
    $region15: #{tpu_custom_call.1} parent=1 // pred_check_branch
      %40 = sbr.rel (0) target = $region17
    $region16: #{tpu_custom_call.1} parent=1 // pred_region
      %s42 = ssub.s32 2048, 2048
      %43 = vsyncadd [#allocation6], %s42
      %s44 = sshll.u32 [#allocation7], 4
      %s45 = int_to_ptr.vmem [resolvable:$true] %s44
      %50 = dma.hbm_to_vmem [thread:$0]  %s3, 2048, %s45, [#allocation6], 64, 64, 4
    $region17: #{tpu_custom_call.1} parent=1 // pred_fallthru
      _
    // Predicated region
    $region18: #{tpu_custom_call.1} parent=1 // pred_check
      _
    $region19: #{tpu_custom_call.1} parent=1 // pred_check_branch
      %52 = sbr.rel (0) target = $region21
    $region20: #{tpu_custom_call.1} parent=1 // pred_region
      _
    $region21: #{tpu_custom_call.1} parent=1 // pred_fallthru
      _
    // Predicated region
    $region22: #{tpu_custom_call.1} parent=1 // pred_check
      _
    $region23: #{tpu_custom_call.1} parent=1 // pred_check_branch
      %54 = sbr.rel (0) target = $region25
    $region24: #{tpu_custom_call.1} parent=1 // pred_region
      %55 = dma.done [#allocation3], 1792
    $region25: #{tpu_custom_call.1} parent=1 // pred_fallthru
      _
    // Predicated region
    $region26: #{tpu_custom_call.1} parent=1 // pred_check
      _
    $region27: #{tpu_custom_call.1} parent=1 // pred_check_branch
      %57 = sbr.rel (0) target = $region29
    $region28: #{tpu_custom_call.1} parent=1 // pred_region
      %58 = dma.done [#allocation6], 13312
    $region29: #{tpu_custom_call.1} parent=1 // pred_fallthru
      _
    // Predicated region
    $region30: #{tpu_custom_call.1} parent=1 // pred_check
      _
    $region31: #{tpu_custom_call.1} parent=1 // pred_check_branch
      %60 = sbr.rel (0) target = $region33
    $region32: #{tpu_custom_call.1} parent=1 // pred_region
      %61 = dma.done [#allocation6], 2048
    $region33: #{tpu_custom_call.1} parent=1 // pred_fallthru
      _
    %v63 = vld [vmem:[#allocation2] sm:$0xff]
    %v64 = vld [vmem:[#allocation2 + $0x8] sm:$0x3f]
    %v65 = vld [vmem:[#allocation2 + $0xe] sm:$0xff]
    %v66 = vld [vmem:[#allocation2 + $0x16] sm:$0x3f]
    %v67 = vld [vmem:[#allocation2 + $0x1c] sm:$0xff]
    %v68 = vld [vmem:[#allocation2 + $0x24] sm:$0x3f]
    %v69 = vld [vmem:[#allocation2 + $0x2a] sm:$0xff]
    %v70 = vld [vmem:[#allocation2 + $0x32] sm:$0x3f]
    %v71 = vld [vmem:[#allocation2 + $0x38] sm:$0xff]
    %v72 = vld [vmem:[#allocation2 + $0x40] sm:$0x3f]
    %v73 = vld [vmem:[#allocation2 + $0x46] sm:$0xff]
    %v74 = vld [vmem:[#allocation2 + $0x4e] sm:$0x3f]
    %v75 = vld [vmem:[#allocation2 + $0x54] sm:$0xff]
    %v76 = vld [vmem:[#allocation2 + $0x5c] sm:$0x3f]
    %v77 = vld [vmem:[#allocation2 + $0x62] sm:$0xff]
    %v78 = vld [vmem:[#allocation2 + $0x6a] sm:$0x3f]
    %v95 = vcombine.low %v63, %v65
    %v96 = vcombine.high %v63, %v65
    %v97 = vcombine.low %v67, %v69
    %v98 = vcombine.high %v67, %v69
    %v100 = vunpack.c.l.s4 1983009808
    %v101 = vunpack.c.0.s8 %v100
    %v102 = vlaneseq
    %v103 = vshrl.u32 %v102, 7
    %v104 = vsub.s32 %v101, %v103
    %v105 = vrot.slane %v95, %v104
    %v107 = vunpack.c.l.s4 1983009808
    %v108 = vunpack.c.0.s8 %v107
    %v109 = vlaneseq
    %v110 = vshrl.u32 %v109, 7
    %v111 = vsub.s32 %v108, %v110
    %v112 = vrot.slane %v96, %v111
    %v114 = vunpack.c.l.s4 1983009808
    %v115 = vunpack.c.0.s8 %v114
    %v116 = vlaneseq
    %v117 = vshrl.u32 %v116, 7
    %v118 = vsub.s32 %v115, %v117
    %v119 = vrot.slane %v97, %v118
    %v121 = vunpack.c.l.s4 1983009808
    %v122 = vunpack.c.0.s8 %v121
    %v123 = vlaneseq
    %v124 = vshrl.u32 %v123, 7
    %v125 = vsub.s32 %v122, %v124
    %v126 = vrot.slane %v98, %v125
    %v127 = vcombine.low %v105, %v119
    %v128 = vcombine.high %v105, %v119
    %v129 = vcombine.low %v112, %v126
    %v130 = vcombine.high %v112, %v126
    %v131 = vcombine.low %v64, %v66
    %v132 = vcombine.high %v64, %v66
    %v133 = vcombine.low %v68, %v70
    %v134 = vcombine.high %v68, %v70
    %v136 = vunpack.c.l.s4 1983009808
    %v137 = vunpack.c.0.s8 %v136
    %v138 = vlaneseq
    %v139 = vshrl.u32 %v138, 7
    %v140 = vsub.s32 %v137, %v139
    %v141 = vrot.slane %v131, %v140
    %v143 = vunpack.c.l.s4 1983009808
    %v144 = vunpack.c.0.s8 %v143
    %v145 = vlaneseq
    %v146 = vshrl.u32 %v145, 7
    %v147 = vsub.s32 %v144, %v146
    %v148 = vrot.slane %v132, %v147
    %v150 = vunpack.c.l.s4 1983009808
    %v151 = vunpack.c.0.s8 %v150
    %v152 = vlaneseq
    %v153 = vshrl.u32 %v152, 7
    %v154 = vsub.s32 %v151, %v153
    %v155 = vrot.slane %v133, %v154
    %v157 = vunpack.c.l.s4 1983009808
    %v158 = vunpack.c.0.s8 %v157
    %v159 = vlaneseq
    %v160 = vshrl.u32 %v159, 7
    %v161 = vsub.s32 %v158, %v160
    %v162 = vrot.slane %v134, %v161
    %v163 = vcombine.low %v141, %v155
    %v164 = vcombine.high %v141, %v155
    %v165 = vcombine.low %v148, %v162
    %v166 = vcombine.low %v71, %v73
    %v167 = vcombine.high %v71, %v73
    %v168 = vcombine.low %v75, %v77
    %v169 = vcombine.high %v75, %v77
    %v171 = vunpack.c.l.s4 1983009808
    %v172 = vunpack.c.0.s8 %v171
    %v173 = vlaneseq
    %v174 = vshrl.u32 %v173, 7
    %v175 = vsub.s32 %v172, %v174
    %v176 = vrot.slane %v166, %v175
    %v178 = vunpack.c.l.s4 1983009808
    %v179 = vunpack.c.0.s8 %v178
    %v180 = vlaneseq
    %v181 = vshrl.u32 %v180, 7
    %v182 = vsub.s32 %v179, %v181
    %v183 = vrot.slane %v167, %v182
    %v185 = vunpack.c.l.s4 1983009808
    %v186 = vunpack.c.0.s8 %v185
    %v187 = vlaneseq
    %v188 = vshrl.u32 %v187, 7
    %v189 = vsub.s32 %v186, %v188
    %v190 = vrot.slane %v168, %v189
    %v192 = vunpack.c.l.s4 1983009808
    %v193 = vunpack.c.0.s8 %v192
    %v194 = vlaneseq
    %v195 = vshrl.u32 %v194, 7
    %v196 = vsub.s32 %v193, %v195
    %v197 = vrot.slane %v169, %v196
    %v198 = vcombine.low %v176, %v190
    %v199 = vcombine.high %v176, %v190
    %v200 = vcombine.low %v183, %v197
    %v201 = vcombine.high %v183, %v197
    %v202 = vcombine.low %v72, %v74
    %v203 = vcombine.high %v72, %v74
    %v204 = vcombine.low %v76, %v78
    %v205 = vcombine.high %v76, %v78
    %v207 = vunpack.c.l.s4 1983009808
    %v208 = vunpack.c.0.s8 %v207
    %v209 = vlaneseq
    %v210 = vshrl.u32 %v209, 7
    %v211 = vsub.s32 %v208, %v210
    %v212 = vrot.slane %v202, %v211
    %v214 = vunpack.c.l.s4 1983009808
    %v215 = vunpack.c.0.s8 %v214
    %v216 = vlaneseq
    %v217 = vshrl.u32 %v216, 7
    %v218 = vsub.s32 %v215, %v217
    %v219 = vrot.slane %v203, %v218
    %v221 = vunpack.c.l.s4 1983009808
    %v222 = vunpack.c.0.s8 %v221
    %v223 = vlaneseq
    %v224 = vshrl.u32 %v223, 7
    %v225 = vsub.s32 %v222, %v224
    %v226 = vrot.slane %v204, %v225
    %v228 = vunpack.c.l.s4 1983009808
    %v229 = vunpack.c.0.s8 %v228
    %v230 = vlaneseq
    %v231 = vshrl.u32 %v230, 7
    %v232 = vsub.s32 %v229, %v231
    %v233 = vrot.slane %v205, %v232
    %v234 = vcombine.low %v212, %v226
    %v235 = vcombine.high %v212, %v226
    %v236 = vcombine.low %v219, %v233
    %v251 = vpack.c.bf16 %v198, %v127
    %v252 = vpack.c.bf16 %v199, %v128
    %v253 = vpack.c.bf16 %v200, %v129
    %v254 = vpack.c.bf16 %v201, %v130
    %v255 = vpack.c.bf16 %v234, %v163
    %v256 = vpack.c.bf16 %v235, %v164
    %v257 = vpack.c.bf16 %v236, %v165
    %v258 = vld [vmem:[#allocation5] sm:$0xff]
    %v259 = vld [vmem:[#allocation5 + $0x8] sm:$0xff]
    %v260 = vld [vmem:[#allocation5 + $0x10] sm:$0xff]
    %v261 = vld [vmem:[#allocation5 + $0x18] sm:$0xff]
    %v262 = vld [vmem:[#allocation5 + $0x20] sm:$0xff]
    %v263 = vld [vmem:[#allocation5 + $0x28] sm:$0xff]
    %v264 = vld [vmem:[#allocation5 + $0x30] sm:$0xff]
    %v265 = vld [vmem:[#allocation5 + $0x38] sm:$0xff]
    %v266 = vld [vmem:[#allocation5 + $0x40] sm:$0xff]
    %v267 = vld [vmem:[#allocation5 + $0x48] sm:$0xff]
    %v268 = vld [vmem:[#allocation5 + $0x50] sm:$0xff]
    %v269 = vld [vmem:[#allocation5 + $0x58] sm:$0xff]
    %v270 = vld [vmem:[#allocation5 + $0x60] sm:$0xff]
    %v271 = vld [vmem:[#allocation5 + $0x68] sm:$0xff]
    %v272 = vld [vmem:[#allocation5 + $0x70] sm:$0xff]
    %v273 = vld [vmem:[#allocation5 + $0x78] sm:$0xff]
    %v274 = vld [vmem:[#allocation5 + $0x80] sm:$0xff]
    %v275 = vld [vmem:[#allocation5 + $0x88] sm:$0xff]
    %v276 = vld [vmem:[#allocation5 + $0x90] sm:$0xff]
    %v277 = vld [vmem:[#allocation5 + $0x98] sm:$0xff]
    %v278 = vld [vmem:[#allocation5 + $0xa0] sm:$0xff]
    %v279 = vld [vmem:[#allocation5 + $0xa8] sm:$0xff]
    %v280 = vld [vmem:[#allocation5 + $0xb0] sm:$0xff]
    %v281 = vld [vmem:[#allocation5 + $0xb8] sm:$0xff]
    %v282 = vld [vmem:[#allocation5 + $0xc0] sm:$0xff]
    %v283 = vld [vmem:[#allocation5 + $0xc8] sm:$0xff]
    %v284 = vld [vmem:[#allocation5 + $0xd0] sm:$0xff]
    %v285 = vld [vmem:[#allocation5 + $0xd8] sm:$0xff]
    %v286 = vld [vmem:[#allocation5 + $0xe0] sm:$0xff]
    %v287 = vld [vmem:[#allocation5 + $0xe8] sm:$0xff]
    %v288 = vld [vmem:[#allocation5 + $0xf0] sm:$0xff]
    %v289 = vld [vmem:[#allocation5 + $0xf8] sm:$0xff]
    %v290 = vld [vmem:[#allocation5 + $0x100] sm:$0xff]
    %v291 = vld [vmem:[#allocation5 + $0x108] sm:$0xff]
    %v292 = vld [vmem:[#allocation5 + $0x110] sm:$0xff]
    %v293 = vld [vmem:[#allocation5 + $0x118] sm:$0xff]
    %v294 = vld [vmem:[#allocation5 + $0x120] sm:$0xff]
    %v295 = vld [vmem:[#allocation5 + $0x128] sm:$0xff]
    %v296 = vld [vmem:[#allocation5 + $0x130] sm:$0xff]
    %v297 = vld [vmem:[#allocation5 + $0x138] sm:$0xff]
    %v298 = vld [vmem:[#allocation5 + $0x140] sm:$0xff]
    %v299 = vld [vmem:[#allocation5 + $0x148] sm:$0xff]
    %v300 = vld [vmem:[#allocation5 + $0x150] sm:$0xff]
    %v301 = vld [vmem:[#allocation5 + $0x158] sm:$0xff]
    %v302 = vld [vmem:[#allocation5 + $0x160] sm:$0xff]
    %v303 = vld [vmem:[#allocation5 + $0x168] sm:$0xff]
    %v304 = vld [vmem:[#allocation5 + $0x170] sm:$0xff]
    %v305 = vld [vmem:[#allocation5 + $0x178] sm:$0xff]
    %v306 = vld [vmem:[#allocation5 + $0x180] sm:$0xff]
    %v307 = vld [vmem:[#allocation5 + $0x188] sm:$0xff]
    %v308 = vld [vmem:[#allocation5 + $0x190] sm:$0xff]
    %v309 = vld [vmem:[#allocation5 + $0x198] sm:$0xff]
    %v310 = vld [vmem:[#allocation5 + $0x1a0] sm:$0xff]
    %v311 = vld [vmem:[#allocation5 + $0x1a8] sm:$0xff]
    %v312 = vld [vmem:[#allocation5 + $0x1b0] sm:$0xff]
    %v313 = vld [vmem:[#allocation5 + $0x1b8] sm:$0xff]
    %v314 = vld [vmem:[#allocation5 + $0x1c0] sm:$0xff]
    %v315 = vld [vmem:[#allocation5 + $0x1c8] sm:$0xff]
    %v316 = vld [vmem:[#allocation5 + $0x1d0] sm:$0xff]
    %v317 = vld [vmem:[#allocation5 + $0x1d8] sm:$0xff]
    %v318 = vld [vmem:[#allocation5 + $0x1e0] sm:$0xff]
    %v319 = vld [vmem:[#allocation5 + $0x1e8] sm:$0xff]
    %v320 = vld [vmem:[#allocation5 + $0x1f0] sm:$0xff]
    %v321 = vld [vmem:[#allocation5 + $0x1f8] sm:$0xff]
    %v322 = vld [vmem:[#allocation5 + $0x200] sm:$0xff]
    %v323 = vld [vmem:[#allocation5 + $0x208] sm:$0xff]
    %v324 = vld [vmem:[#allocation5 + $0x210] sm:$0xff]
    %v325 = vld [vmem:[#allocation5 + $0x218] sm:$0xff]
    %v326 = vld [vmem:[#allocation5 + $0x220] sm:$0xff]
    %v327 = vld [vmem:[#allocation5 + $0x228] sm:$0xff]
    %v328 = vld [vmem:[#allocation5 + $0x230] sm:$0xff]
    %v329 = vld [vmem:[#allocation5 + $0x238] sm:$0xff]
    %v330 = vld [vmem:[#allocation5 + $0x240] sm:$0xff]
    %v331 = vld [vmem:[#allocation5 + $0x248] sm:$0xff]
    %v332 = vld [vmem:[#allocation5 + $0x250] sm:$0xff]
    %v333 = vld [vmem:[#allocation5 + $0x258] sm:$0xff]
    %v334 = vld [vmem:[#allocation5 + $0x260] sm:$0xff]
    %v335 = vld [vmem:[#allocation5 + $0x268] sm:$0xff]
    %v336 = vld [vmem:[#allocation5 + $0x270] sm:$0xff]
    %v337 = vld [vmem:[#allocation5 + $0x278] sm:$0xff]
    %v338 = vld [vmem:[#allocation5 + $0x280] sm:$0xff]
    %v339 = vld [vmem:[#allocation5 + $0x288] sm:$0xff]
    %v340 = vld [vmem:[#allocation5 + $0x290] sm:$0xff]
    %v341 = vld [vmem:[#allocation5 + $0x298] sm:$0xff]
    %v342 = vld [vmem:[#allocation5 + $0x2a0] sm:$0xff]
    %v343 = vld [vmem:[#allocation5 + $0x2a8] sm:$0xff]
    %v344 = vld [vmem:[#allocation5 + $0x2b0] sm:$0xff]
    %v345 = vld [vmem:[#allocation5 + $0x2b8] sm:$0xff]
    %v346 = vld [vmem:[#allocation5 + $0x2c0] sm:$0xff]
    %v347 = vld [vmem:[#allocation5 + $0x2c8] sm:$0xff]
    %v348 = vld [vmem:[#allocation5 + $0x2d0] sm:$0xff]
    %v349 = vld [vmem:[#allocation5 + $0x2d8] sm:$0xff]
    %v350 = vld [vmem:[#allocation5 + $0x2e0] sm:$0xff]
    %v351 = vld [vmem:[#allocation5 + $0x2e8] sm:$0xff]
    %v352 = vld [vmem:[#allocation5 + $0x2f0] sm:$0xff]
    %v353 = vld [vmem:[#allocation5 + $0x2f8] sm:$0xff]
    %v354 = vld [vmem:[#allocation5 + $0x300] sm:$0xff]
    %v355 = vld [vmem:[#allocation5 + $0x308] sm:$0xff]
    %v356 = vld [vmem:[#allocation5 + $0x310] sm:$0xff]
    %v357 = vld [vmem:[#allocation5 + $0x318] sm:$0xff]
    %v358 = vld [vmem:[#allocation5 + $0x320] sm:$0xff]
    %v359 = vld [vmem:[#allocation5 + $0x328] sm:$0xff]
    %v360 = vld [vmem:[#allocation5 + $0x330] sm:$0xff]
    %v361 = vld [vmem:[#allocation5 + $0x338] sm:$0xff]
    %v362 = vld [vmem:[%s2] sm:$0x3]
    %v364 = vlaneseq
    %v365 = vshrl.u32 %v364, 7
    %v366 = vsub.s32 0, %v365
    %v367 = vrot.slane %v362, %v366
    %v368 = vlaneseq
    %v369 = vshrl.u32 %v368, 7
    %v370 = vsub.s32 1, %v369
    %v371 = vrot.slane %v362, %v370
    %v478 = vunpack.c.l.b16 %v258
    %v479 = vunpack.c.h.b16 %v258
    %v480 = vunpack.c.l.b16 %v259
    %v481 = vunpack.c.h.b16 %v259
    %v482 = vunpack.c.l.b16 %v260
    %v483 = vunpack.c.h.b16 %v260
    %v484 = vunpack.c.l.b16 %v261
    %v485 = vunpack.c.h.b16 %v261
    %v486 = vunpack.c.l.b16 %v262
    %v487 = vunpack.c.h.b16 %v262
    %v488 = vunpack.c.l.b16 %v263
    %v489 = vunpack.c.h.b16 %v263
    %v490 = vunpack.c.l.b16 %v264
    %v491 = vunpack.c.h.b16 %v264
    %v492 = vunpack.c.l.b16 %v265
    %v493 = vunpack.c.h.b16 %v265
    %v494 = vunpack.c.l.b16 %v266
    %v495 = vunpack.c.h.b16 %v266
    %v496 = vunpack.c.l.b16 %v267
    %v497 = vunpack.c.h.b16 %v267
    %v498 = vunpack.c.l.b16 %v268
    %v499 = vunpack.c.h.b16 %v268
    %v500 = vunpack.c.l.b16 %v269
    %v501 = vunpack.c.h.b16 %v269
    %v502 = vunpack.c.l.b16 %v270
    %v503 = vunpack.c.h.b16 %v270
    %v504 = vunpack.c.l.b16 %v271
    %v505 = vunpack.c.h.b16 %v271
    %v506 = vunpack.c.l.b16 %v272
    %v507 = vunpack.c.h.b16 %v272
    %v508 = vunpack.c.l.b16 %v273
    %v509 = vunpack.c.h.b16 %v273
    %v510 = vunpack.c.l.b16 %v274
    %v511 = vunpack.c.h.b16 %v274
    %v512 = vunpack.c.l.b16 %v275
    %v513 = vunpack.c.h.b16 %v275
    %v514 = vunpack.c.l.b16 %v276
    %v515 = vunpack.c.h.b16 %v276
    %v516 = vunpack.c.l.b16 %v277
    %v517 = vunpack.c.h.b16 %v277
    %v518 = vunpack.c.l.b16 %v278
    %v519 = vunpack.c.h.b16 %v278
    %v520 = vunpack.c.l.b16 %v279
    %v521 = vunpack.c.h.b16 %v279
    %v522 = vunpack.c.l.b16 %v280
    %v523 = vunpack.c.h.b16 %v280
    %v524 = vunpack.c.l.b16 %v281
    %v525 = vunpack.c.h.b16 %v281
    %v526 = vunpack.c.l.b16 %v282
    %v527 = vunpack.c.h.b16 %v282
    %v528 = vunpack.c.l.b16 %v283
    %v529 = vunpack.c.h.b16 %v283
    %v530 = vunpack.c.l.b16 %v284
    %v531 = vunpack.c.h.b16 %v284
    %v532 = vunpack.c.l.b16 %v285
    %v533 = vunpack.c.h.b16 %v285
    %v534 = vunpack.c.l.b16 %v286
    %v535 = vunpack.c.h.b16 %v286
    %v536 = vunpack.c.l.b16 %v287
    %v537 = vunpack.c.h.b16 %v287
    %v538 = vunpack.c.l.b16 %v288
    %v539 = vunpack.c.h.b16 %v288
    %v540 = vunpack.c.l.b16 %v289
    %v541 = vunpack.c.h.b16 %v289
    %v542 = vunpack.c.l.b16 %v290
    %v543 = vunpack.c.h.b16 %v290
    %v544 = vunpack.c.l.b16 %v291
    %v545 = vunpack.c.h.b16 %v291
    %v546 = vunpack.c.l.b16 %v292
    %v547 = vunpack.c.h.b16 %v292
    %v548 = vunpack.c.l.b16 %v293
    %v549 = vunpack.c.h.b16 %v293
    %v550 = vunpack.c.l.b16 %v294
    %v551 = vunpack.c.h.b16 %v294
    %v552 = vunpack.c.l.b16 %v295
    %v553 = vunpack.c.h.b16 %v295
    %v554 = vunpack.c.l.b16 %v296
    %v555 = vunpack.c.h.b16 %v296
    %v556 = vunpack.c.l.b16 %v297
    %v557 = vunpack.c.h.b16 %v297
    %v558 = vunpack.c.l.b16 %v298
    %v559 = vunpack.c.h.b16 %v298
    %v560 = vunpack.c.l.b16 %v299
    %v561 = vunpack.c.h.b16 %v299
    %v562 = vunpack.c.l.b16 %v300
    %v563 = vunpack.c.h.b16 %v300
    %v564 = vunpack.c.l.b16 %v301
    %v565 = vunpack.c.h.b16 %v301
    %v566 = vunpack.c.l.b16 %v302
    %v567 = vunpack.c.h.b16 %v302
    %v568 = vunpack.c.l.b16 %v303
    %v569 = vunpack.c.h.b16 %v303
    %v570 = vunpack.c.l.b16 %v304
    %v571 = vunpack.c.h.b16 %v304
    %v572 = vunpack.c.l.b16 %v305
    %v573 = vunpack.c.h.b16 %v305
    %v574 = vunpack.c.l.b16 %v306
    %v575 = vunpack.c.h.b16 %v306
    %v576 = vunpack.c.l.b16 %v307
    %v577 = vunpack.c.h.b16 %v307
    %v578 = vunpack.c.l.b16 %v308
    %v579 = vunpack.c.h.b16 %v308
    %v580 = vunpack.c.l.b16 %v309
    %v581 = vunpack.c.h.b16 %v309
    %v582 = vunpack.c.l.b16 %v310
    %v583 = vunpack.c.h.b16 %v310
    %v584 = vunpack.c.l.b16 %v311
    %v585 = vunpack.c.h.b16 %v311
    %v586 = vunpack.c.l.b16 %v312
    %v587 = vunpack.c.h.b16 %v312
    %v588 = vunpack.c.l.b16 %v313
    %v589 = vunpack.c.h.b16 %v313
    %v590 = vunpack.c.l.b16 %v314
    %v591 = vunpack.c.h.b16 %v314
    %v592 = vunpack.c.l.b16 %v315
    %v593 = vunpack.c.h.b16 %v315
    %v594 = vunpack.c.l.b16 %v316
    %v595 = vunpack.c.h.b16 %v316
    %v596 = vunpack.c.l.b16 %v317
    %v597 = vunpack.c.h.b16 %v317
    %v598 = vunpack.c.l.b16 %v318
    %v599 = vunpack.c.h.b16 %v318
    %v600 = vunpack.c.l.b16 %v319
    %v601 = vunpack.c.h.b16 %v319
    %v602 = vunpack.c.l.b16 %v320
    %v603 = vunpack.c.h.b16 %v320
    %v604 = vunpack.c.l.b16 %v321
    %v605 = vunpack.c.h.b16 %v321
    %v606 = vunpack.c.l.b16 %v322
    %v607 = vunpack.c.h.b16 %v322
    %v608 = vunpack.c.l.b16 %v323
    %v609 = vunpack.c.h.b16 %v323
    %v610 = vunpack.c.l.b16 %v324
    %v611 = vunpack.c.h.b16 %v324
    %v612 = vunpack.c.l.b16 %v325
    %v613 = vunpack.c.h.b16 %v325
    %v614 = vunpack.c.l.b16 %v326
    %v615 = vunpack.c.h.b16 %v326
    %v616 = vunpack.c.l.b16 %v327
    %v617 = vunpack.c.h.b16 %v327
    %v618 = vunpack.c.l.b16 %v328
    %v619 = vunpack.c.h.b16 %v328
    %v620 = vunpack.c.l.b16 %v329
    %v621 = vunpack.c.h.b16 %v329
    %v622 = vunpack.c.l.b16 %v330
    %v623 = vunpack.c.h.b16 %v330
    %v624 = vunpack.c.l.b16 %v331
    %v625 = vunpack.c.h.b16 %v331
    %v626 = vunpack.c.l.b16 %v332
    %v627 = vunpack.c.h.b16 %v332
    %v628 = vunpack.c.l.b16 %v333
    %v629 = vunpack.c.h.b16 %v333
    %v630 = vunpack.c.l.b16 %v334
    %v631 = vunpack.c.h.b16 %v334
    %v632 = vunpack.c.l.b16 %v335
    %v633 = vunpack.c.h.b16 %v335
    %v634 = vunpack.c.l.b16 %v336
    %v635 = vunpack.c.h.b16 %v336
    %v636 = vunpack.c.l.b16 %v337
    %v637 = vunpack.c.h.b16 %v337
    %v638 = vunpack.c.l.b16 %v338
    %v639 = vunpack.c.h.b16 %v338
    %v640 = vunpack.c.l.b16 %v339
    %v641 = vunpack.c.h.b16 %v339
    %v642 = vunpack.c.l.b16 %v340
    %v643 = vunpack.c.h.b16 %v340
    %v644 = vunpack.c.l.b16 %v341
    %v645 = vunpack.c.h.b16 %v341
    %v646 = vunpack.c.l.b16 %v342
    %v647 = vunpack.c.h.b16 %v342
    %v648 = vunpack.c.l.b16 %v343
    %v649 = vunpack.c.h.b16 %v343
    %v650 = vunpack.c.l.b16 %v344
    %v651 = vunpack.c.h.b16 %v344
    %v652 = vunpack.c.l.b16 %v345
    %v653 = vunpack.c.h.b16 %v345
    %v654 = vunpack.c.l.b16 %v346
    %v655 = vunpack.c.h.b16 %v346
    %v656 = vunpack.c.l.b16 %v347
    %v657 = vunpack.c.h.b16 %v347
    %v658 = vunpack.c.l.b16 %v348
    %v659 = vunpack.c.h.b16 %v348
    %v660 = vunpack.c.l.b16 %v349
    %v661 = vunpack.c.h.b16 %v349
    %v662 = vunpack.c.l.b16 %v350
    %v663 = vunpack.c.h.b16 %v350
    %v664 = vunpack.c.l.b16 %v351
    %v665 = vunpack.c.h.b16 %v351
    %v666 = vunpack.c.l.b16 %v352
    %v667 = vunpack.c.h.b16 %v352
    %v668 = vunpack.c.l.b16 %v353
    %v669 = vunpack.c.h.b16 %v353
    %v670 = vunpack.c.l.b16 %v354
    %v671 = vunpack.c.h.b16 %v354
    %v672 = vunpack.c.l.b16 %v355
    %v673 = vunpack.c.h.b16 %v355
    %v674 = vunpack.c.l.b16 %v356
    %v675 = vunpack.c.h.b16 %v356
    %v676 = vunpack.c.l.b16 %v357
    %v677 = vunpack.c.h.b16 %v357
    %v678 = vunpack.c.l.b16 %v358
    %v679 = vunpack.c.h.b16 %v358
    %v680 = vunpack.c.l.b16 %v359
    %v681 = vunpack.c.h.b16 %v359
    %v682 = vunpack.c.l.b16 %v360
    %v683 = vunpack.c.h.b16 %v360
    %v684 = vunpack.c.l.b16 %v361
    %v685 = vunpack.c.h.b16 %v361
    %v686 = vpack.c.b16 %v480, %v478
    %v687 = vpack.c.b16 %v481, %v479
    %v688 = vpack.c.b16 %v484, %v482
    %v689 = vpack.c.b16 %v485, %v483
    %v690 = vpack.c.b16 %v488, %v486
    %v691 = vpack.c.b16 %v489, %v487
    %v692 = vpack.c.b16 %v492, %v490
    %v693 = vpack.c.b16 %v493, %v491
    %v694 = vpack.c.b16 %v496, %v494
    %v695 = vpack.c.b16 %v497, %v495
    %v696 = vpack.c.b16 %v500, %v498
    %v697 = vpack.c.b16 %v501, %v499
    %v698 = vpack.c.b16 %v504, %v502
    %v699 = vpack.c.b16 %v505, %v503
    %v700 = vpack.c.b16 %v508, %v506
    %v701 = vpack.c.b16 %v509, %v507
    %v702 = vpack.c.b16 %v512, %v510
    %v703 = vpack.c.b16 %v513, %v511
    %v704 = vpack.c.b16 %v516, %v514
    %v705 = vpack.c.b16 %v517, %v515
    %v706 = vpack.c.b16 %v520, %v518
    %v707 = vpack.c.b16 %v521, %v519
    %v708 = vpack.c.b16 %v524, %v522
    %v709 = vpack.c.b16 %v525, %v523
    %v710 = vpack.c.b16 %v528, %v526
    %v711 = vpack.c.b16 %v529, %v527
    %v712 = vpack.c.b16 %v532, %v530
    %v713 = vpack.c.b16 %v533, %v531
    %v714 = vpack.c.b16 %v536, %v534
    %v715 = vpack.c.b16 %v537, %v535
    %v716 = vpack.c.b16 %v540, %v538
    %v717 = vpack.c.b16 %v541, %v539
    %v718 = vpack.c.b16 %v544, %v542
    %v719 = vpack.c.b16 %v545, %v543
    %v720 = vpack.c.b16 %v548, %v546
    %v721 = vpack.c.b16 %v549, %v547
    %v722 = vpack.c.b16 %v552, %v550
    %v723 = vpack.c.b16 %v553, %v551
    %v724 = vpack.c.b16 %v556, %v554
    %v725 = vpack.c.b16 %v557, %v555
    %v726 = vpack.c.b16 %v560, %v558
    %v727 = vpack.c.b16 %v561, %v559
    %v728 = vpack.c.b16 %v564, %v562
    %v729 = vpack.c.b16 %v565, %v563
    %v730 = vpack.c.b16 %v568, %v566
    %v731 = vpack.c.b16 %v569, %v567
    %v732 = vpack.c.b16 %v572, %v570
    %v733 = vpack.c.b16 %v573, %v571
    %v734 = vpack.c.b16 %v576, %v574
    %v735 = vpack.c.b16 %v577, %v575
    %v736 = vpack.c.b16 %v580, %v578
    %v737 = vpack.c.b16 %v581, %v579
    %v738 = vpack.c.b16 %v584, %v582
    %v739 = vpack.c.b16 %v585, %v583
    %v740 = vpack.c.b16 %v588, %v586
    %v741 = vpack.c.b16 %v589, %v587
    %v742 = vpack.c.b16 %v592, %v590
    %v743 = vpack.c.b16 %v593, %v591
    %v744 = vpack.c.b16 %v596, %v594
    %v745 = vpack.c.b16 %v597, %v595
    %v746 = vpack.c.b16 %v600, %v598
    %v747 = vpack.c.b16 %v601, %v599
    %v748 = vpack.c.b16 %v604, %v602
    %v749 = vpack.c.b16 %v605, %v603
    %v750 = vpack.c.b16 %v608, %v606
    %v751 = vpack.c.b16 %v609, %v607
    %v752 = vpack.c.b16 %v612, %v610
    %v753 = vpack.c.b16 %v613, %v611
    %v754 = vpack.c.b16 %v616, %v614
    %v755 = vpack.c.b16 %v617, %v615
    %v756 = vpack.c.b16 %v620, %v618
    %v757 = vpack.c.b16 %v621, %v619
    %v758 = vpack.c.b16 %v624, %v622
    %v759 = vpack.c.b16 %v625, %v623
    %v760 = vpack.c.b16 %v628, %v626
    %v761 = vpack.c.b16 %v629, %v627
    %v762 = vpack.c.b16 %v632, %v630
    %v763 = vpack.c.b16 %v633, %v631
    %v764 = vpack.c.b16 %v636, %v634
    %v765 = vpack.c.b16 %v637, %v635
    %v766 = vpack.c.b16 %v640, %v638
    %v767 = vpack.c.b16 %v641, %v639
    %v768 = vpack.c.b16 %v644, %v642
    %v769 = vpack.c.b16 %v645, %v643
    %v770 = vpack.c.b16 %v648, %v646
    %v771 = vpack.c.b16 %v649, %v647
    %v772 = vpack.c.b16 %v652, %v650
    %v773 = vpack.c.b16 %v653, %v651
    %v774 = vpack.c.b16 %v656, %v654
    %v775 = vpack.c.b16 %v657, %v655
    %v776 = vpack.c.b16 %v660, %v658
    %v777 = vpack.c.b16 %v661, %v659
    %v778 = vpack.c.b16 %v664, %v662
    %v779 = vpack.c.b16 %v665, %v663
    %v780 = vpack.c.b16 %v668, %v666
    %v781 = vpack.c.b16 %v669, %v667
    %v782 = vpack.c.b16 %v672, %v670
    %v783 = vpack.c.b16 %v673, %v671
    %v784 = vpack.c.b16 %v676, %v674
    %v785 = vpack.c.b16 %v677, %v675
    %v786 = vpack.c.b16 %v680, %v678
    %v787 = vpack.c.b16 %v681, %v679
    %v788 = vpack.c.b16 %v684, %v682
    %v789 = vpack.c.b16 %v685, %v683
    %vm894 = vcmask 523264
    %v896 = vsel %vm894, %v257, 0
    %898 = vmatprep.subr.bf16.mxu0 %v687
    %899 = vmatpush1.bf16.msra.mxu0 %v686
    %900 = vmatprep.subr.bf16.mxu0 %v689
    %901 = vmatpush1.bf16.msra.mxu0 %v688
    %902 = vmatprep.subr.bf16.mxu0 %v691
    %903 = vmatpush1.bf16.msra.mxu0 %v690
    %904 = vmatprep.subr.bf16.mxu0 %v693
    %905 = vmatpush1.bf16.msra.mxu0 %v692
    %906 = vmatprep.subr.bf16.mxu0 %v695
    %907 = vmatpush1.bf16.msra.mxu0 %v694
    %908 = vmatprep.subr.bf16.mxu0 %v697
    %909 = vmatpush1.bf16.msra.mxu0 %v696
    %910 = vmatprep.subr.bf16.mxu0 %v699
    %911 = vmatpush1.bf16.msra.mxu0 %v698
    %912 = vmatprep.subr.bf16.mxu0 %v701
    %913 = vmatpush1.bf16.msra.mxu0 %v700
    %914 = vmatprep.subr.bf16.mxu0 %v703
    %915 = vmatpush1.bf16.msra.mxu0 %v702
    %916 = vmatprep.subr.bf16.mxu0 %v705
    %917 = vmatpush1.bf16.msra.mxu0 %v704
    %918 = vmatprep.subr.bf16.mxu0 %v707
    %919 = vmatpush1.bf16.msra.mxu0 %v706
    %920 = vmatprep.subr.bf16.mxu0 %v709
    %921 = vmatpush1.bf16.msra.mxu0 %v708
    %922 = vmatprep.subr.bf16.mxu0 %v711
    %923 = vmatpush1.bf16.msra.mxu0 %v710
    %924 = vmatprep.subr.bf16.mxu0 %v713
    %925 = vmatpush1.bf16.msra.mxu0 %v712
    %926 = vmatprep.subr.bf16.mxu0 %v715
    %927 = vmatpush1.bf16.msra.mxu0 %v714
    %928 = vmatprep.subr.bf16.mxu0 %v717
    %929 = vmatpush1.bf16.msra.mxu0 %v716
    %930 = vmatprep.mubr.bf16.mxu0 %v252
    %931 = vmatmul.mubr.bf16.gmra.mrb[0].mxu0 %v251
    %v932 = vpop.f32.mrb[0].mxu0
    %v933 = vadd.f32 %v367, %v932
    %v934 = vpop.f32.mrb[0].mxu0
    %v935 = vadd.f32 %v371, %v934
    %v936 = vpop.f32.mrb[0].mxu0
    %v937 = vadd.f32 %v367, %v936
    %v938 = vpop.f32.mrb[0].mxu0
    %v939 = vadd.f32 %v371, %v938
    %940 = vdwg.mxu0
    %941 = vmatprep.subr.bf16.mxu0 %v719
    %942 = vmatpush1.bf16.msra.mxu0 %v718
    %943 = vmatprep.subr.bf16.mxu0 %v721
    %944 = vmatpush1.bf16.msra.mxu0 %v720
    %945 = vmatprep.subr.bf16.mxu0 %v723
    %946 = vmatpush1.bf16.msra.mxu0 %v722
    %947 = vmatprep.subr.bf16.mxu0 %v725
    %948 = vmatpush1.bf16.msra.mxu0 %v724
    %949 = vmatprep.subr.bf16.mxu0 %v727
    %950 = vmatpush1.bf16.msra.mxu0 %v726
    %951 = vmatprep.subr.bf16.mxu0 %v729
    %952 = vmatpush1.bf16.msra.mxu0 %v728
    %953 = vmatprep.subr.bf16.mxu0 %v731
    %954 = vmatpush1.bf16.msra.mxu0 %v730
    %955 = vmatprep.subr.bf16.mxu0 %v733
    %956 = vmatpush1.bf16.msra.mxu0 %v732
    %957 = vmatprep.subr.bf16.mxu0 %v735
    %958 = vmatpush1.bf16.msra.mxu0 %v734
    %959 = vmatprep.subr.bf16.mxu0 %v737
    %960 = vmatpush1.bf16.msra.mxu0 %v736
    %961 = vmatprep.subr.bf16.mxu0 %v739
    %962 = vmatpush1.bf16.msra.mxu0 %v738
    %963 = vmatprep.subr.bf16.mxu0 %v741
    %964 = vmatpush1.bf16.msra.mxu0 %v740
    %965 = vmatprep.subr.bf16.mxu0 %v743
    %966 = vmatpush1.bf16.msra.mxu0 %v742
    %967 = vmatprep.subr.bf16.mxu0 %v745
    %968 = vmatpush1.bf16.msra.mxu0 %v744
    %969 = vmatprep.subr.bf16.mxu0 %v747
    %970 = vmatpush1.bf16.msra.mxu0 %v746
    %971 = vmatprep.subr.bf16.mxu0 %v749
    %972 = vmatpush1.bf16.msra.mxu0 %v748
    %973 = vmatprep.mubr.bf16.mxu0 %v254
    %974 = vmatmul.mubr.bf16.gmra.mrb[0].mxu0 %v253
    %v975 = vpop.f32.mrb[0].mxu0
    %v976 = vadd.f32 %v933, %v975
    %v977 = vpop.f32.mrb[0].mxu0
    %v978 = vadd.f32 %v935, %v977
    %v979 = vpop.f32.mrb[0].mxu0
    %v980 = vadd.f32 %v937, %v979
    %v981 = vpop.f32.mrb[0].mxu0
    %v982 = vadd.f32 %v939, %v981
    %983 = vdwg.mxu0
    %984 = vmatprep.subr.bf16.mxu0 %v751
    %985 = vmatpush1.bf16.msra.mxu0 %v750
    %986 = vmatprep.subr.bf16.mxu0 %v753
    %987 = vmatpush1.bf16.msra.mxu0 %v752
    %988 = vmatprep.subr.bf16.mxu0 %v755
    %989 = vmatpush1.bf16.msra.mxu0 %v754
    %990 = vmatprep.subr.bf16.mxu0 %v757
    %991 = vmatpush1.bf16.msra.mxu0 %v756
    %992 = vmatprep.subr.bf16.mxu0 %v759
    %993 = vmatpush1.bf16.msra.mxu0 %v758
    %994 = vmatprep.subr.bf16.mxu0 %v761
    %995 = vmatpush1.bf16.msra.mxu0 %v760
    %996 = vmatprep.subr.bf16.mxu0 %v763
    %997 = vmatpush1.bf16.msra.mxu0 %v762
    %998 = vmatprep.subr.bf16.mxu0 %v765
    %999 = vmatpush1.bf16.msra.mxu0 %v764
    %1000 = vmatprep.subr.bf16.mxu0 %v767
    %1001 = vmatpush1.bf16.msra.mxu0 %v766
    %1002 = vmatprep.subr.bf16.mxu0 %v769
    %1003 = vmatpush1.bf16.msra.mxu0 %v768
    %1004 = vmatprep.subr.bf16.mxu0 %v771
    %1005 = vmatpush1.bf16.msra.mxu0 %v770
    %1006 = vmatprep.subr.bf16.mxu0 %v773
    %1007 = vmatpush1.bf16.msra.mxu0 %v772
    %1008 = vmatprep.subr.bf16.mxu0 %v775
    %1009 = vmatpush1.bf16.msra.mxu0 %v774
    %1010 = vmatprep.subr.bf16.mxu0 %v777
    %1011 = vmatpush1.bf16.msra.mxu0 %v776
    %1012 = vmatprep.subr.bf16.mxu0 %v779
    %1013 = vmatpush1.bf16.msra.mxu0 %v778
    %1014 = vmatprep.subr.bf16.mxu0 %v781
    %1015 = vmatpush1.bf16.msra.mxu0 %v780
    %1016 = vmatprep.mubr.bf16.mxu0 %v256
    %1017 = vmatmul.mubr.bf16.gmra.mrb[0].mxu0 %v255
    %v1018 = vpop.f32.mrb[0].mxu0
    %v1019 = vadd.f32 %v976, %v1018
    %v1020 = vpop.f32.mrb[0].mxu0
    %v1021 = vadd.f32 %v978, %v1020
    %v1022 = vpop.f32.mrb[0].mxu0
    %v1023 = vadd.f32 %v980, %v1022
    %v1024 = vpop.f32.mrb[0].mxu0
    %v1025 = vadd.f32 %v982, %v1024
    %1026 = vdwg.mxu0
    %1027 = vmatprep.subr.bf16.mxu0 %v783
    %1028 = vmatpush1.bf16.msra.mxu0 %v782
    %1029 = vmatprep.subr.bf16.mxu0 %v785
    %1030 = vmatpush1.bf16.msra.mxu0 %v784
    %1031 = vmatprep.subr.bf16.mxu0 %v787
    %1032 = vmatpush1.bf16.msra.mxu0 %v786
    %1033 = vmatprep.subr.bf16.mxu0 %v789
    %1034 = vmatpush1.bf16.msra.mxu0 %v788
    %1035 = vmatprep.subr.bf16.mxu0 0
    %1036 = vmatpush1.bf16.msra.mxu0 0
    %1037 = vmatprep.subr.bf16.mxu0 0
    %1038 = vmatpush1.bf16.msra.mxu0 0
    %1039 = vmatprep.subr.bf16.mxu0 0
    %1040 = vmatpush1.bf16.msra.mxu0 0
    %1041 = vmatprep.subr.bf16.mxu0 0
    %1042 = vmatpush1.bf16.msra.mxu0 0
    %1043 = vmatprep.subr.bf16.mxu0 0
    %1044 = vmatpush1.bf16.msra.mxu0 0
    %1045 = vmatprep.subr.bf16.mxu0 0
    %1046 = vmatpush1.bf16.msra.mxu0 0
    %1047 = vmatprep.subr.bf16.mxu0 0
    %1048 = vmatpush1.bf16.msra.mxu0 0
    %1049 = vmatprep.subr.bf16.mxu0 0
    %1050 = vmatpush1.bf16.msra.mxu0 0
    %1051 = vmatprep.subr.bf16.mxu0 0
    %1052 = vmatpush1.bf16.msra.mxu0 0
    %1053 = vmatprep.subr.bf16.mxu0 0
    %1054 = vmatpush1.bf16.msra.mxu0 0
    %1055 = vmatprep.subr.bf16.mxu0 0
    %1056 = vmatpush1.bf16.msra.mxu0 0
    %1057 = vmatprep.subr.bf16.mxu0 0
    %1058 = vmatpush1.bf16.msra.mxu0 0
    %1059 = vmatprep.mubr.bf16.mxu0 0
    %1060 = vmatmul.mubr.bf16.gmra.mrb[0].mxu0 %v896
    %v1061 = vpop.f32.mrb[0].mxu0
    %v1062 = vadd.f32 %v1019, %v1061
    %v1063 = vpop.f32.mrb[0].mxu0
    %v1064 = vadd.f32 %v1021, %v1063
    %v1065 = vpop.f32.mrb[0].mxu0
    %v1066 = vadd.f32 %v1023, %v1065
    %v1067 = vpop.f32.mrb[0].mxu0
    %v1068 = vadd.f32 %v1025, %v1067
    %1069 = vdwg.mxu0
    %v1070 = vmax.f32 %v1062, 0.0
    %v1071 = vmax.f32 %v1064, 0.0
    %v1072 = vmax.f32 %v1066, 0.0
    %v1073 = vmax.f32 %v1068, 0.0
    %v1074 = vpack.c.bf16 %v1072, %v1070
    %v1075 = vpack.c.bf16 %v1073, %v1071
    %v1076 = vld [vmem:[#allocation7] sm:$0xf]
    %v1077 = vld [vmem:[#allocation7 + $0x4] sm:$0xf]
    %v1078 = vld [vmem:[#allocation7 + $0x8] sm:$0xf]
    %v1079 = vld [vmem:[#allocation7 + $0xc] sm:$0xf]
    %v1080 = vld [vmem:[#allocation7 + $0x10] sm:$0xf]
    %v1081 = vld [vmem:[#allocation7 + $0x14] sm:$0xf]
    %v1082 = vld [vmem:[#allocation7 + $0x18] sm:$0xf]
    %v1083 = vld [vmem:[#allocation7 + $0x1c] sm:$0xf]
    %v1084 = vld [vmem:[#allocation7 + $0x20] sm:$0xf]
    %v1085 = vld [vmem:[#allocation7 + $0x24] sm:$0xf]
    %v1086 = vld [vmem:[#allocation7 + $0x28] sm:$0xf]
    %v1087 = vld [vmem:[#allocation7 + $0x2c] sm:$0xf]
    %v1088 = vld [vmem:[#allocation7 + $0x30] sm:$0xf]
    %v1089 = vld [vmem:[#allocation7 + $0x34] sm:$0xf]
    %v1090 = vld [vmem:[#allocation7 + $0x38] sm:$0xf]
    %v1091 = vld [vmem:[#allocation7 + $0x3c] sm:$0xf]
    %v1092 = vld [vmem:[#allocation7 + $0x40] sm:$0xf]
    %v1093 = vld [vmem:[#allocation7 + $0x44] sm:$0xf]
    %v1094 = vld [vmem:[#allocation7 + $0x48] sm:$0xf]
    %v1095 = vld [vmem:[#allocation7 + $0x4c] sm:$0xf]
    %v1096 = vld [vmem:[#allocation7 + $0x50] sm:$0xf]
    %v1097 = vld [vmem:[#allocation7 + $0x54] sm:$0xf]
    %v1098 = vld [vmem:[#allocation7 + $0x58] sm:$0xf]
    %v1099 = vld [vmem:[#allocation7 + $0x5c] sm:$0xf]
    %v1100 = vld [vmem:[#allocation7 + $0x60] sm:$0xf]
    %v1101 = vld [vmem:[#allocation7 + $0x64] sm:$0xf]
    %v1102 = vld [vmem:[#allocation7 + $0x68] sm:$0xf]
    %v1103 = vld [vmem:[#allocation7 + $0x6c] sm:$0xf]
    %v1104 = vld [vmem:[#allocation7 + $0x70] sm:$0xf]
    %v1105 = vld [vmem:[#allocation7 + $0x74] sm:$0xf]
    %v1106 = vld [vmem:[#allocation7 + $0x78] sm:$0xf]
    %v1107 = vld [vmem:[#allocation7 + $0x7c] sm:$0xf]
    %v1108 = vld [vmem:[%s4] sm:$0x1]
    %v1110 = vlaneseq
    %v1111 = vshrl.u32 %v1110, 7
    %v1112 = vsub.s32 0, %v1111
    %v1113 = vrot.slane %v1108, %v1112
    %v1147 = vunpack.c.l.b16 %v1076
    %v1148 = vunpack.c.l.b16 %v1077
    %v1149 = vunpack.c.l.b16 %v1078
    %v1150 = vunpack.c.l.b16 %v1079
    %v1151 = vunpack.c.l.b16 %v1080
    %v1152 = vunpack.c.l.b16 %v1081
    %v1153 = vunpack.c.l.b16 %v1082
    %v1154 = vunpack.c.l.b16 %v1083
    %v1155 = vunpack.c.l.b16 %v1084
    %v1156 = vunpack.c.l.b16 %v1085
    %v1157 = vunpack.c.l.b16 %v1086
    %v1158 = vunpack.c.l.b16 %v1087
    %v1159 = vunpack.c.l.b16 %v1088
    %v1160 = vunpack.c.l.b16 %v1089
    %v1161 = vunpack.c.l.b16 %v1090
    %v1162 = vunpack.c.l.b16 %v1091
    %v1163 = vunpack.c.l.b16 %v1092
    %v1164 = vunpack.c.l.b16 %v1093
    %v1165 = vunpack.c.l.b16 %v1094
    %v1166 = vunpack.c.l.b16 %v1095
    %v1167 = vunpack.c.l.b16 %v1096
    %v1168 = vunpack.c.l.b16 %v1097
    %v1169 = vunpack.c.l.b16 %v1098
    %v1170 = vunpack.c.l.b16 %v1099
    %v1171 = vunpack.c.l.b16 %v1100
    %v1172 = vunpack.c.l.b16 %v1101
    %v1173 = vunpack.c.l.b16 %v1102
    %v1174 = vunpack.c.l.b16 %v1103
    %v1175 = vunpack.c.l.b16 %v1104
    %v1176 = vunpack.c.l.b16 %v1105
    %v1177 = vunpack.c.l.b16 %v1106
    %v1178 = vunpack.c.l.b16 %v1107
    %v1179 = vpack.c.b16 %v1148, %v1147
    %v1180 = vpack.c.b16 %v1150, %v1149
    %v1181 = vpack.c.b16 %v1152, %v1151
    %v1182 = vpack.c.b16 %v1154, %v1153
    %v1183 = vpack.c.b16 %v1156, %v1155
    %v1184 = vpack.c.b16 %v1158, %v1157
    %v1185 = vpack.c.b16 %v1160, %v1159
    %v1186 = vpack.c.b16 %v1162, %v1161
    %v1187 = vpack.c.b16 %v1164, %v1163
    %v1188 = vpack.c.b16 %v1166, %v1165
    %v1189 = vpack.c.b16 %v1168, %v1167
    %v1190 = vpack.c.b16 %v1170, %v1169
    %v1191 = vpack.c.b16 %v1172, %v1171
    %v1192 = vpack.c.b16 %v1174, %v1173
    %v1193 = vpack.c.b16 %v1176, %v1175
    %v1194 = vpack.c.b16 %v1178, %v1177
    %1211 = vmatprep.subr.bf16.mxu0 0
    %1212 = vmatpush1.bf16.msra.mxu0 %v1179
    %1213 = vmatprep.subr.bf16.mxu0 0
    %1214 = vmatpush1.bf16.msra.mxu0 %v1180
    %1215 = vmatprep.subr.bf16.mxu0 0
    %1216 = vmatpush1.bf16.msra.mxu0 %v1181
    %1217 = vmatprep.subr.bf16.mxu0 0
    %1218 = vmatpush1.bf16.msra.mxu0 %v1182
    %1219 = vmatprep.subr.bf16.mxu0 0
    %1220 = vmatpush1.bf16.msra.mxu0 %v1183
    %1221 = vmatprep.subr.bf16.mxu0 0
    %1222 = vmatpush1.bf16.msra.mxu0 %v1184
    %1223 = vmatprep.subr.bf16.mxu0 0
    %1224 = vmatpush1.bf16.msra.mxu0 %v1185
    %1225 = vmatprep.subr.bf16.mxu0 0
    %1226 = vmatpush1.bf16.msra.mxu0 %v1186
    %1227 = vmatprep.subr.bf16.mxu0 0
    %1228 = vmatpush1.bf16.msra.mxu0 %v1187
    %1229 = vmatprep.subr.bf16.mxu0 0
    %1230 = vmatpush1.bf16.msra.mxu0 %v1188
    %1231 = vmatprep.subr.bf16.mxu0 0
    %1232 = vmatpush1.bf16.msra.mxu0 %v1189
    %1233 = vmatprep.subr.bf16.mxu0 0
    %1234 = vmatpush1.bf16.msra.mxu0 %v1190
    %1235 = vmatprep.subr.bf16.mxu0 0
    %1236 = vmatpush1.bf16.msra.mxu0 %v1191
    %1237 = vmatprep.subr.bf16.mxu0 0
    %1238 = vmatpush1.bf16.msra.mxu0 %v1192
    %1239 = vmatprep.subr.bf16.mxu0 0
    %1240 = vmatpush1.bf16.msra.mxu0 %v1193
    %1241 = vmatprep.subr.bf16.mxu0 0
    %1242 = vmatpush1.bf16.msra.mxu0 %v1194
    %1243 = vmatprep.mubr.bf16.mxu0 %v1075
    %1244 = vmatmul.mubr.bf16.gmra.mrb[0].mxu0 %v1074
    %v1245 = vpop.f32.mrb[0].mxu0
    %v1246 = vadd.f32 %v1113, %v1245
    %v1247 = vpop.f32.mrb[0].mxu0
    %v1248 = vpop.f32.mrb[0].mxu0
    %v1249 = vadd.f32 %v1113, %v1248
    %v1250 = vpop.f32.mrb[0].mxu0
    %1251 = vdwg.mxu0
    %v1252 = vmax.f32 %v1246, 0.0
    %v1253 = vmax.f32 %v1249, 0.0
    %1254 = vst [vmem:[#allocation8] sm:$0xff] %v1252
    %1255 = vst [vmem:[#allocation8 + $0x8] sm:$0xff] %v1253
    // Predicated region
    $region34: #{tpu_custom_call.1} parent=1 // pred_check
      _
    $region35: #{tpu_custom_call.1} parent=1 // pred_check_branch
      %1257 = sbr.rel (0) target = $region37
    $region36: #{tpu_custom_call.1} parent=1 // pred_region
      %s1259 = ssub.s32 256, 32
      %1260 = vsyncadd [#allocation4], %s1259
      %s1261 = sshll.u32 [#allocation8], 4
      %s1262 = int_to_ptr.vmem [resolvable:$true] %s1261
      %1267 = dma.vmem_to_hbm [thread:$0]  %s1262, 32, %s5, [#allocation4], 32, 32, 2
    $region37: #{tpu_custom_call.1} parent=1 // pred_fallthru
      _
    // Predicated region
    $region38: #{tpu_custom_call.1} parent=1 // pred_check
      _
    $region39: #{tpu_custom_call.1} parent=1 // pred_check_branch
      %1269 = sbr.rel (0) target = $region41
    $region40: #{tpu_custom_call.1} parent=1 // pred_region
      %1270 = dma.done [#allocation4], 256
    $region41: #{tpu_custom_call.1} parent=1 // pred_fallthru
      _
    %1271 = vsyncpa [#allocation3], 1
    %1272 = vsyncpa [#allocation6], 1
    %1273 = vsyncpa [#allocation4], 1

</llo_original>
